<compile_context>
chip_gen: v6e
topology: v6e:2x2x1
jax: 0.10.0
libtpu: 0.0.40
codegen_flags: <defaults>
</compile_context>

<pallas_src>
import jax
import jax.numpy as jnp
import numpy as np
from jax import lax
from jax.experimental import pallas as pl
from jax.experimental.pallas import tpu as pltpu

DIM_MODEL = 32
PAD = 32            # every layer width zero-padded to this (uniform 32x32 MXU tiles)
BN_EPS = 1e-5       # PyTorch BatchNorm1d default eps


def encoder_kernel(x_ref, w_ref, b_ref, o_ref):
    """One batch tile: x_ref (TB, 32) -> o_ref (1, TB).

    w_ref: (5, 32, 32)  folded weights (out, in) per layer.
    b_ref: (32, 8)      column i = shift (BN beta + folded linear bias) of layer i.
    """
    # Layer 1: contract the shared feature axis of W1 (32,32) and x (TB,32)
    # -> activations land directly as (32, TB): batch on lanes from here on.
    # TODO(synk): if profiling shows an explicit vxpose of the full x tile here and the
    # kernel becomes XLU-limited, switch layer 1 to (TB,32) orientation and transpose
    # only the 16 valid output columns.
    h = lax.dot_general(w_ref[0], x_ref[...], (((1,), (1,)), ((), ())),
                        preferred_element_type=jnp.float32)            # (32, TB)
    h = jnp.maximum(h + b_ref[:, 0:1], 0.0)                            # shift + ReLU

    # Layers 2..5 (BN scale already folded into the zero-padded 32x32 weights).
    for i in range(1, 5):
        z = jnp.dot(w_ref[i], h, preferred_element_type=jnp.float32)   # (32, TB)
        h = jnp.maximum(z + b_ref[:, i:i + 1], 0.0)
    # Dropout(p=0.2) is identity in eval mode.

    # AdaptiveAvgPool1d(1): mean over the 4 valid features (dim_model//8 = 4); padded
    # feature rows are exactly zero.  A 4-term VPU sublane sum replaces the old pool
    # matmul (no wasted 32xTB MXU result drain).
    pooled = 0.25 * (h[0:1, :] + h[1:2, :] + h[2:3, :] + h[3:4, :])    # (1, TB)
    o_ref[...] = pooled                                                # lane-dense store


def _round_up(n, m):
    return ((n + m - 1) // m) * m


def _pick_tile(B, max_tile):
    """Batch tile: multiple of 128 on the lane axis, large enough to amortize the
    ~0.35 us/grid-step overhead, but split into >= 2 tiles whenever possible so the
    'parallel' grid axis shards across both v7x TensorCores."""
    b128 = _round_up(B, 128)
    tb = min(max_tile, b128)
    if b128 >= 2 * 128 and b128 // tb < 2:
        tb = min(max_tile, _round_up((b128 + 1) // 2, 128))
    return tb


def init_params(key, dim_model):
    """Deterministic synthetic parameters (same shapes as Basic_Encoder.__init__),
    packed into two slabs for the kernel + raw params kept for a host reference."""
    dims = [dim_model, dim_model // 2, dim_model // 2,
            dim_model // 4, dim_model // 4, dim_model // 8]
    w_slab = np.zeros((5, PAD, PAD), np.float32)
    b_slab = np.zeros((PAD, 8), np.float32)
    raw = []
    for i in range(5):
        fan_in, fan_out = dims[i], dims[i + 1]
        key, kw, kb, kg, kbe, km, kv = jax.random.split(key, 7)
        bound = 1.0 / float(np.sqrt(fan_in))
        W = np.asarray(jax.random.uniform(kw, (fan_out, fan_in), jnp.float32, -bound, bound))
        b = np.asarray(jax.random.uniform(kb, (fan_out,), jnp.float32, -bound, bound))
        gamma = np.asarray(1.0 + 0.1 * jax.random.normal(kg, (fan_out,), jnp.float32))
        beta = np.asarray(0.1 * jax.random.normal(kbe, (fan_out,), jnp.float32))
        running_mean = np.asarray(0.1 * jax.random.normal(km, (fan_out,), jnp.float32))
        running_var = np.asarray(1.0 + 0.1 * jax.random.uniform(kv, (fan_out,), jnp.float32))
        # Eval-mode BN + linear bias folded into weight scale + per-feature shift.
        inv_std = 1.0 / np.sqrt(running_var + BN_EPS)
        scale = gamma * inv_std                              # (out,)
        shift = beta + (b - running_mean) * scale            # (out,)
        w_slab[i, :fan_out, :fan_in] = W * scale[:, None]    # BN scale folded into W
        b_slab[:fan_out, i] = shift
        raw.append((W, b, gamma, beta, running_mean, running_var))
    return jnp.asarray(w_slab), jnp.asarray(b_slab), raw


def reference_forward(x, raw):
    """Host float64 reference of the original (unfolded) module in eval mode."""
    h = np.asarray(x, np.float64)
    for (W, b, gamma, beta, rm, rv) in raw:
        z = h @ W.astype(np.float64).T + b.astype(np.float64)
        z = (z - rm) / np.sqrt(rv.astype(np.float64) + BN_EPS) * gamma + beta
        h = np.maximum(z, 0.0)
    return h.mean(axis=1, keepdims=True)                     # AdaptiveAvgPool1d(1)


def basic_encoder(x, w_slab, b_slab, *, max_tile=8192):
    """x: (B, 32) float32 -> (B, 1) float32."""
    B, F = x.shape
    assert F == DIM_MODEL
    TB = _pick_tile(B, max_tile)
    Bp = _round_up(B, TB)
    if Bp != B:
        x = jnp.pad(x, ((0, Bp - B), (0, 0)))
    out = pl.pallas_call(
        encoder_kernel,
        out_shape=jax.ShapeDtypeStruct((1, Bp), jnp.float32),
        grid=(Bp // TB,),
        in_specs=[
            pl.BlockSpec((TB, DIM_MODEL), lambda i: (i, 0)),     # x tile (pipelined)
            pl.BlockSpec((5, PAD, PAD), lambda i: (0, 0, 0)),    # packed weights (resident)
            pl.BlockSpec((PAD, 8), lambda i: (0, 0)),            # packed shifts (resident)
        ],
        out_specs=pl.BlockSpec((1, TB), lambda i: (0, i)),       # lane-dense output slab
        compiler_params=pltpu.CompilerParams(
            dimension_semantics=("parallel",)),                  # both TCs on v7x
    )(x, w_slab, b_slab)
    # TODO(synk): inference-only kernel — training-mode BatchNorm/Dropout not implemented.
    return out[0, :B].reshape(B, 1)


if __name__ == "__main__":
    key = jax.random.PRNGKey(0)
    kx, kp, kx2 = jax.random.split(key, 3)
    w_slab, b_slab, raw = init_params(kp, DIM_MODEL)

    # Small shape consistent with the module (batch=8, dim_model=32).
    B = 8
    x = jax.random.normal(kx, (B, DIM_MODEL), jnp.float32)
    out = basic_encoder(x, w_slab, b_slab)
    jax.block_until_ready(out)
    assert out.shape == (B, 1) and out.dtype == jnp.float32
    ref = reference_forward(np.asarray(x), raw)
    np.testing.assert_allclose(np.asarray(out, np.float64), ref, rtol=5e-3, atol=5e-3)

    # A second, slightly larger batch exercises padding and the >=2-step grid path.
    B2 = 300
    x2 = jax.random.normal(kx2, (B2, DIM_MODEL), jnp.float32)
    out2 = basic_encoder(x2, w_slab, b_slab)
    jax.block_until_ready(out2)
    assert out2.shape == (B2, 1)
    ref2 = reference_forward(np.asarray(x2), raw)
    np.testing.assert_allclose(np.asarray(out2, np.float64), ref2, rtol=5e-3, atol=5e-3)

    print("KERNEL_OK")
</pallas_src>

<mosaic_0001>
module attributes {stable_mosaic.version = 11 : i64} {
  func.func @encoder_kernel(%arg0: i32, %arg1: memref<128x32xf32, #tpu.memory_space<vmem>>, %arg2: memref<5x32x32xf32, #tpu.memory_space<vmem>>, %arg3: memref<32x8xf32, #tpu.memory_space<vmem>>, %arg4: memref<1x128xf32, #tpu.memory_space<vmem>>) attributes {dimension_semantics = [#tpu.dimension_semantics<parallel>], iteration_bounds = array<i64: 1>, scalar_prefetch = 0 : i64, scratch_operands = 0 : i64, tpu.core_type = #tpu.core_type<tc>, window_params = [{transform_indices = @transform_0, window_bounds = array<i64: 128, 32>}, {pipeline_mode = #tpu.pipeline_mode<synchronous>, transform_indices = @transform_1, window_bounds = array<i64: 5, 32, 32>}, {pipeline_mode = #tpu.pipeline_mode<synchronous>, transform_indices = @transform_2, window_bounds = array<i64: 32, 8>}, {transform_indices = @transform_3, window_bounds = array<i64: 1, 128>}]} {
    %c0 = arith.constant 0 : index
    %c0_0 = arith.constant 0 : index
    %c0_1 = arith.constant 0 : index
    %0 = vector.load %arg2[%c0, %c0_0, %c0_1] : memref<5x32x32xf32, #tpu.memory_space<vmem>>, vector<1x32x32xf32>
    %1 = vector.shape_cast %0 : vector<1x32x32xf32> to vector<32x32xf32>
    %c0_2 = arith.constant 0 : index
    %c0_3 = arith.constant 0 : index
    %2 = vector.load %arg1[%c0_2, %c0_3] : memref<128x32xf32, #tpu.memory_space<vmem>>, vector<128x32xf32>
    %cst = arith.constant dense<0.000000e+00> : vector<32x128xf32>
    %3 = tpu.matmul %1, %2, %cst {dimension_numbers = #tpu.dot_dimension_numbers<[1], [1], [0], [0], [0, 0, 1, 0], [], []>} : vector<32x32xf32>, vector<128x32xf32>, vector<32x128xf32> -> vector<32x128xf32>
    %c0_4 = arith.constant 0 : index
    %c0_5 = arith.constant 0 : index
    %4 = vector.load %arg3[%c0_4, %c0_5] : memref<32x8xf32, #tpu.memory_space<vmem>>, vector<32x1xf32>
    %5 = vector.broadcast %4 : vector<32x1xf32> to vector<32x128xf32>
    %6 = arith.addf %3, %5 : vector<32x128xf32>
    %cst_6 = arith.constant 0.000000e+00 : f32
    %7 = vector.broadcast %cst_6 : f32 to vector<32x128xf32>
    %8 = arith.maximumf %6, %7 : vector<32x128xf32>
    %c1 = arith.constant 1 : index
    %c0_7 = arith.constant 0 : index
    %c0_8 = arith.constant 0 : index
    %9 = vector.load %arg2[%c1, %c0_7, %c0_8] : memref<5x32x32xf32, #tpu.memory_space<vmem>>, vector<1x32x32xf32>
    %10 = vector.shape_cast %9 : vector<1x32x32xf32> to vector<32x32xf32>
    %cst_9 = arith.constant dense<0.000000e+00> : vector<32x128xf32>
    %11 = tpu.matmul %10, %8, %cst_9 {dimension_numbers = #tpu.dot_dimension_numbers<[1], [0], [0], [1], [0, 0, 1, 1], [], []>} : vector<32x32xf32>, vector<32x128xf32>, vector<32x128xf32> -> vector<32x128xf32>
    %c0_10 = arith.constant 0 : index
    %c1_11 = arith.constant 1 : index
    %12 = vector.load %arg3[%c0_10, %c1_11] : memref<32x8xf32, #tpu.memory_space<vmem>>, vector<32x1xf32>
    %13 = vector.broadcast %12 : vector<32x1xf32> to vector<32x128xf32>
    %14 = arith.addf %11, %13 : vector<32x128xf32>
    %cst_12 = arith.constant 0.000000e+00 : f32
    %15 = vector.broadcast %cst_12 : f32 to vector<32x128xf32>
    %16 = arith.maximumf %14, %15 : vector<32x128xf32>
    %c2 = arith.constant 2 : index
    %c0_13 = arith.constant 0 : index
    %c0_14 = arith.constant 0 : index
    %17 = vector.load %arg2[%c2, %c0_13, %c0_14] : memref<5x32x32xf32, #tpu.memory_space<vmem>>, vector<1x32x32xf32>
    %18 = vector.shape_cast %17 : vector<1x32x32xf32> to vector<32x32xf32>
    %cst_15 = arith.constant dense<0.000000e+00> : vector<32x128xf32>
    %19 = tpu.matmul %18, %16, %cst_15 {dimension_numbers = #tpu.dot_dimension_numbers<[1], [0], [0], [1], [0, 0, 1, 1], [], []>} : vector<32x32xf32>, vector<32x128xf32>, vector<32x128xf32> -> vector<32x128xf32>
    %c0_16 = arith.constant 0 : index
    %c2_17 = arith.constant 2 : index
    %20 = vector.load %arg3[%c0_16, %c2_17] : memref<32x8xf32, #tpu.memory_space<vmem>>, vector<32x1xf32>
    %21 = vector.broadcast %20 : vector<32x1xf32> to vector<32x128xf32>
    %22 = arith.addf %19, %21 : vector<32x128xf32>
    %cst_18 = arith.constant 0.000000e+00 : f32
    %23 = vector.broadcast %cst_18 : f32 to vector<32x128xf32>
    %24 = arith.maximumf %22, %23 : vector<32x128xf32>
    %c3 = arith.constant 3 : index
    %c0_19 = arith.constant 0 : index
    %c0_20 = arith.constant 0 : index
    %25 = vector.load %arg2[%c3, %c0_19, %c0_20] : memref<5x32x32xf32, #tpu.memory_space<vmem>>, vector<1x32x32xf32>
    %26 = vector.shape_cast %25 : vector<1x32x32xf32> to vector<32x32xf32>
    %cst_21 = arith.constant dense<0.000000e+00> : vector<32x128xf32>
    %27 = tpu.matmul %26, %24, %cst_21 {dimension_numbers = #tpu.dot_dimension_numbers<[1], [0], [0], [1], [0, 0, 1, 1], [], []>} : vector<32x32xf32>, vector<32x128xf32>, vector<32x128xf32> -> vector<32x128xf32>
    %c0_22 = arith.constant 0 : index
    %c3_23 = arith.constant 3 : index
    %28 = vector.load %arg3[%c0_22, %c3_23] : memref<32x8xf32, #tpu.memory_space<vmem>>, vector<32x1xf32>
    %29 = vector.broadcast %28 : vector<32x1xf32> to vector<32x128xf32>
    %30 = arith.addf %27, %29 : vector<32x128xf32>
    %cst_24 = arith.constant 0.000000e+00 : f32
    %31 = vector.broadcast %cst_24 : f32 to vector<32x128xf32>
    %32 = arith.maximumf %30, %31 : vector<32x128xf32>
    %c4 = arith.constant 4 : index
    %c0_25 = arith.constant 0 : index
    %c0_26 = arith.constant 0 : index
    %33 = vector.load %arg2[%c4, %c0_25, %c0_26] : memref<5x32x32xf32, #tpu.memory_space<vmem>>, vector<1x32x32xf32>
    %34 = vector.shape_cast %33 : vector<1x32x32xf32> to vector<32x32xf32>
    %cst_27 = arith.constant dense<0.000000e+00> : vector<32x128xf32>
    %35 = tpu.matmul %34, %32, %cst_27 {dimension_numbers = #tpu.dot_dimension_numbers<[1], [0], [0], [1], [0, 0, 1, 1], [], []>} : vector<32x32xf32>, vector<32x128xf32>, vector<32x128xf32> -> vector<32x128xf32>
    %c0_28 = arith.constant 0 : index
    %c4_29 = arith.constant 4 : index
    %36 = vector.load %arg3[%c0_28, %c4_29] : memref<32x8xf32, #tpu.memory_space<vmem>>, vector<32x1xf32>
    %37 = vector.broadcast %36 : vector<32x1xf32> to vector<32x128xf32>
    %38 = arith.addf %35, %37 : vector<32x128xf32>
    %cst_30 = arith.constant 0.000000e+00 : f32
    %39 = vector.broadcast %cst_30 : f32 to vector<32x128xf32>
    %40 = arith.maximumf %38, %39 : vector<32x128xf32>
    %41 = vector.extract_strided_slice %40 {offsets = [0, 0], sizes = [1, 128], strides = [1, 1]} : vector<32x128xf32> to vector<1x128xf32>
    %42 = vector.extract_strided_slice %40 {offsets = [1, 0], sizes = [1, 128], strides = [1, 1]} : vector<32x128xf32> to vector<1x128xf32>
    %43 = arith.addf %41, %42 : vector<1x128xf32>
    %44 = vector.extract_strided_slice %40 {offsets = [2, 0], sizes = [1, 128], strides = [1, 1]} : vector<32x128xf32> to vector<1x128xf32>
    %45 = arith.addf %43, %44 : vector<1x128xf32>
    %46 = vector.extract_strided_slice %40 {offsets = [3, 0], sizes = [1, 128], strides = [1, 1]} : vector<32x128xf32> to vector<1x128xf32>
    %47 = arith.addf %45, %46 : vector<1x128xf32>
    %cst_31 = arith.constant 2.500000e-01 : f32
    %48 = vector.broadcast %cst_31 : f32 to vector<1x128xf32>
    %49 = arith.mulf %48, %47 : vector<1x128xf32>
    %c0_32 = arith.constant 0 : index
    %c0_33 = arith.constant 0 : index
    %50 = vector.load %arg4[%c0_32, %c0_33] : memref<1x128xf32, #tpu.memory_space<vmem>>, vector<1x128xf32>
    tpu.vector_store %arg4[%c0_32, %c0_33], %49 {strides = array<i32>} : memref<1x128xf32, #tpu.memory_space<vmem>>, vector<1x128xf32>,
    return
  }
  func.func @transform_0(%arg0: i32) -> (i32, i32) {
    %c0_i32 = arith.constant 0 : i32
    %c0_i32_0 = arith.constant 0 : i32
    return %arg0, %c0_i32 : i32, i32
  }
  func.func @transform_1(%arg0: i32) -> (i32, i32, i32) {
    %c0_i32 = arith.constant 0 : i32
    %c0_i32_0 = arith.constant 0 : i32
    %c0_i32_1 = arith.constant 0 : i32
    %c0_i32_2 = arith.constant 0 : i32
    return %c0_i32, %c0_i32_0, %c0_i32_1 : i32, i32, i32
  }
  func.func @transform_2(%arg0: i32) -> (i32, i32) {
    %c0_i32 = arith.constant 0 : i32
    %c0_i32_0 = arith.constant 0 : i32
    %c0_i32_1 = arith.constant 0 : i32
    return %c0_i32, %c0_i32_0 : i32, i32
  }
  func.func @transform_3(%arg0: i32) -> (i32, i32) {
    %c0_i32 = arith.constant 0 : i32
    %c0_i32_0 = arith.constant 0 : i32
    return %c0_i32, %arg0 : i32, i32
  }
}

</mosaic_0001>

<llo_original>
// kernel: tpu_custom_call.1
$region0: #{tpu_custom_call.1}
  #allocation0 [shape = 'u32[]', space=smem, size = 0x4, offset = 0x4, fixed_abs, tag = 'smem constant byte address 0x4 - core index']
  #allocation1 [shape = 'u32[144,128]{1,0:T(1,128)}', space=vmem, size = 0x12000, scoped, tag = 'internal scratch']
  %s0 = inlined_call_operand.vmem [shape: f32[128,32], index: 0, kind: input, shape index: {}]
  %s1 = inlined_call_operand.vmem [shape: f32[5,32,32], index: 1, kind: input, shape index: {}]
  %s2 = inlined_call_operand.vmem [shape: f32[32,8], index: 2, kind: input, shape index: {}]
  %s3 = inlined_call_operand.hbm [shape: f32[1,128], index: 3, kind: output, shape index: {}]
  %s4 = sld [smem:[#allocation0]]
  $region22: #{tpu_custom_call.1} parent=0
    _
  %s6 = ssub.s32 1, %s4
  %s7 = scalar_select 0, %s6, %s4
  $region1: #{tpu_custom_call.1} parent=0
    #allocation2 [shape = 'u8[512]{0}', space=vmem, size = 0x400, scoped, tag = 'output window, operand 0, single buffered']
    #allocation3 [shape = 's32[1]{0}', space=sflag, size = 0x4, scoped, tag = 'scoped memory for tpu_custom_call.1']
    %8 = vsyncpa [#allocation3], 0
    // Predicated region
    $region2: #{tpu_custom_call.1} parent=1 // pred_check
      _
    $region3: #{tpu_custom_call.1} parent=1 // pred_check_branch
      %10 = sbr.rel (0) target = $region5
    $region4: #{tpu_custom_call.1} parent=1 // pred_region
      _
    $region5: #{tpu_custom_call.1} parent=1 // pred_fallthru
      _
    // Predicated region
    $region6: #{tpu_custom_call.1} parent=1 // pred_check
      _
    $region7: #{tpu_custom_call.1} parent=1 // pred_check_branch
      %12 = sbr.rel (0) target = $region9
    $region8: #{tpu_custom_call.1} parent=1 // pred_region
      _
    $region9: #{tpu_custom_call.1} parent=1 // pred_fallthru
      _
    // Predicated region
    $region10: #{tpu_custom_call.1} parent=1 // pred_check
      _
    $region11: #{tpu_custom_call.1} parent=1 // pred_check_branch
      %14 = sbr.rel (0) target = $region13
    $region12: #{tpu_custom_call.1} parent=1 // pred_region
      _
    $region13: #{tpu_custom_call.1} parent=1 // pred_fallthru
      _
    %v15 = vld [vmem:[%s1] sm:$0xff]
    %v16 = vld [vmem:[%s1 + $0x8] sm:$0xff]
    %v17 = vld [vmem:[%s1 + $0x10] sm:$0xff]
    %v18 = vld [vmem:[%s1 + $0x18] sm:$0xff]
    %v19 = vld [vmem:[%s0] sm:$0xff]
    %v20 = vld [vmem:[%s0 + $0x8] sm:$0xff]
    %v21 = vld [vmem:[%s0 + $0x10] sm:$0xff]
    %v22 = vld [vmem:[%s0 + $0x18] sm:$0xff]
    %v23 = vld [vmem:[%s0 + $0x20] sm:$0xff]
    %v24 = vld [vmem:[%s0 + $0x28] sm:$0xff]
    %v25 = vld [vmem:[%s0 + $0x30] sm:$0xff]
    %v26 = vld [vmem:[%s0 + $0x38] sm:$0xff]
    %v27 = vld [vmem:[%s0 + $0x40] sm:$0xff]
    %v28 = vld [vmem:[%s0 + $0x48] sm:$0xff]
    %v29 = vld [vmem:[%s0 + $0x50] sm:$0xff]
    %v30 = vld [vmem:[%s0 + $0x58] sm:$0xff]
    %v31 = vld [vmem:[%s0 + $0x60] sm:$0xff]
    %v32 = vld [vmem:[%s0 + $0x68] sm:$0xff]
    %v33 = vld [vmem:[%s0 + $0x70] sm:$0xff]
    %v34 = vld [vmem:[%s0 + $0x78] sm:$0xff]
    %v35 = vld [vmem:[%s2] sm:$0xff]
    %v36 = vld [vmem:[%s2 + $0x8] sm:$0xff]
    %v37 = vld [vmem:[%s2 + $0x10] sm:$0xff]
    %v38 = vld [vmem:[%s2 + $0x18] sm:$0xff]
    %40 = vset.pattern.permute.xlu0 0
    %41 = vperm.xlu0 %40, %v35
    %v42 = vpop.permute.xlu0 %41
    %45 = vset.pattern.permute.xlu0 0
    %46 = vperm.xlu0 %45, %v36
    %v47 = vpop.permute.xlu0 %46
    %50 = vset.pattern.permute.xlu0 0
    %51 = vperm.xlu0 %50, %v37
    %v52 = vpop.permute.xlu0 %51
    %55 = vset.pattern.permute.xlu0 0
    %56 = vperm.xlu0 %55, %v38
    %v57 = vpop.permute.xlu0 %56
    %vm59 = vcmask 261120
    %v61 = vsel %vm59, %v15, 0
    %v64 = vsel %vm59, %v16, 0
    %v67 = vsel %vm59, %v17, 0
    %v70 = vsel %vm59, %v18, 0
    %v73 = vsel %vm59, %v19, 0
    %v76 = vsel %vm59, %v20, 0
    %v79 = vsel %vm59, %v21, 0
    %v82 = vsel %vm59, %v22, 0
    %v85 = vsel %vm59, %v23, 0
    %v88 = vsel %vm59, %v24, 0
    %v91 = vsel %vm59, %v25, 0
    %v94 = vsel %vm59, %v26, 0
    %v97 = vsel %vm59, %v27, 0
    %v100 = vsel %vm59, %v28, 0
    %v103 = vsel %vm59, %v29, 0
    %v106 = vsel %vm59, %v30, 0
    %v109 = vsel %vm59, %v31, 0
    %v112 = vsel %vm59, %v32, 0
    %v115 = vsel %vm59, %v33, 0
    %v118 = vsel %vm59, %v34, 0
    %120 = vmatprep.subr.mxu0 0.0
    %121 = vmatpush1.xpose.msra.mxu0 %v118
    %122 = vmatprep.subr.mxu0 0.0
    %123 = vmatpush1.xpose.msra.mxu0 %v115
    %124 = vmatprep.subr.mxu0 0.0
    %125 = vmatpush1.xpose.msra.mxu0 %v112
    %126 = vmatprep.subr.mxu0 0.0
    %127 = vmatpush1.xpose.msra.mxu0 %v109
    %128 = vmatprep.subr.mxu0 0.0
    %129 = vmatpush1.xpose.msra.mxu0 %v106
    %130 = vmatprep.subr.mxu0 0.0
    %131 = vmatpush1.xpose.msra.mxu0 %v103
    %132 = vmatprep.subr.mxu0 0.0
    %133 = vmatpush1.xpose.msra.mxu0 %v100
    %134 = vmatprep.subr.mxu0 0.0
    %135 = vmatpush1.xpose.msra.mxu0 %v97
    %136 = vmatprep.subr.mxu0 0.0
    %137 = vmatpush1.xpose.msra.mxu0 %v94
    %138 = vmatprep.subr.mxu0 0.0
    %139 = vmatpush1.xpose.msra.mxu0 %v91
    %140 = vmatprep.subr.mxu0 0.0
    %141 = vmatpush1.xpose.msra.mxu0 %v88
    %142 = vmatprep.subr.mxu0 0.0
    %143 = vmatpush1.xpose.msra.mxu0 %v85
    %144 = vmatprep.subr.mxu0 0.0
    %145 = vmatpush1.xpose.msra.mxu0 %v82
    %146 = vmatprep.subr.mxu0 0.0
    %147 = vmatpush1.xpose.msra.mxu0 %v79
    %148 = vmatprep.subr.mxu0 0.0
    %149 = vmatpush1.xpose.msra.mxu0 %v76
    %150 = vmatprep.subr.mxu0 0.0
    %151 = vmatpush1.xpose.msra.mxu0 %v73
    %152 = vmatprep.subr.mxu0 0.0
    %153 = vmatpush2.xpose.msra.mxu0 0.0
    %154 = vmatprep.subr.mxu0 0.0
    %155 = vmatpush2.xpose.msra.mxu0 0.0
    %156 = vmatprep.subr.mxu0 0.0
    %157 = vmatpush2.xpose.msra.mxu0 0.0
    %158 = vmatprep.subr.mxu0 0.0
    %159 = vmatpush2.xpose.msra.mxu0 0.0
    %160 = vmatprep.subr.mxu0 0.0
    %161 = vmatpush2.xpose.msra.mxu0 0.0
    %162 = vmatprep.subr.mxu0 0.0
    %163 = vmatpush2.xpose.msra.mxu0 0.0
    %164 = vmatprep.subr.mxu0 0.0
    %165 = vmatpush2.xpose.msra.mxu0 0.0
    %166 = vmatprep.subr.mxu0 0.0
    %167 = vmatpush2.xpose.msra.mxu0 0.0
    %168 = vmatprep.subr.mxu0 0.0
    %169 = vmatpush2.xpose.msra.mxu0 0.0
    %170 = vmatprep.subr.mxu0 0.0
    %171 = vmatpush2.xpose.msra.mxu0 0.0
    %172 = vmatprep.subr.mxu0 0.0
    %173 = vmatpush2.xpose.msra.mxu0 0.0
    %174 = vmatprep.subr.mxu0 0.0
    %175 = vmatpush2.xpose.msra.mxu0 0.0
    %176 = vmatprep.subr.mxu0 0.0
    %177 = vmatpush2.xpose.msra.mxu0 0.0
    %178 = vmatprep.subr.mxu0 0.0
    %179 = vmatpush2.xpose.msra.mxu0 0.0
    %180 = vmatprep.subr.mxu0 0.0
    %181 = vmatpush2.xpose.msra.mxu0 0.0
    %182 = vmatprep.subr.mxu0 0.0
    %183 = vmatpush2.xpose.msra.mxu0 0.0
    %184 = vmatprep.mubr.f32.mxu0 0.0
    %185 = vmatmul.mubr.f32.gmra.mxu0 %v61
    %v186 = vpop.f32.mrf.mxu0
    %v187 = vadd.f32 %v42, %v186
    %v188 = vpop.f32.mrf.mxu0
    %189 = vmatprep.mubr.f32.mxu0 0.0
    %190 = vmatmul.mubr.f32.gmra.mxu0 %v64
    %v191 = vpop.f32.mrf.mxu0
    %v192 = vadd.f32 %v47, %v191
    %v193 = vpop.f32.mrf.mxu0
    %194 = vmatprep.mubr.f32.mxu0 0.0
    %195 = vmatmul.mubr.f32.gmra.mxu0 %v67
    %v196 = vpop.f32.mrf.mxu0
    %v197 = vadd.f32 %v52, %v196
    %v198 = vpop.f32.mrf.mxu0
    %199 = vmatprep.mubr.f32.mxu0 0.0
    %200 = vmatmul.mubr.f32.gmra.mxu0 %v70
    %v201 = vpop.f32.mrf.mxu0
    %v202 = vadd.f32 %v57, %v201
    %v203 = vpop.f32.mrf.mxu0
    %204 = vdwg.mxu0
    %v205 = vmax.f32 %v187, 0.0
    %v206 = vmax.f32 %v192, 0.0
    %v207 = vmax.f32 %v197, 0.0
    %v208 = vmax.f32 %v202, 0.0
    %s209 = scalar_lea.vmem %s1, 32
    %v210 = vld [vmem:[%s209] sm:$0xff]
    %v211 = vld [vmem:[%s209 + $0x8] sm:$0xff]
    %v212 = vld [vmem:[%s209 + $0x10] sm:$0xff]
    %v213 = vld [vmem:[%s209 + $0x18] sm:$0xff]
    %214 = vset.pattern.permute.xlu0 1
    %215 = vperm.xlu0 %214, %v35
    %v216 = vpop.permute.xlu0 %215
    %218 = vset.pattern.permute.xlu0 1
    %219 = vperm.xlu0 %218, %v36
    %v220 = vpop.permute.xlu0 %219
    %222 = vset.pattern.permute.xlu0 1
    %223 = vperm.xlu0 %222, %v37
    %v224 = vpop.permute.xlu0 %223
    %226 = vset.pattern.permute.xlu0 1
    %227 = vperm.xlu0 %226, %v38
    %v228 = vpop.permute.xlu0 %227
    %v231 = vsel %vm59, %v210, 0
    %v234 = vsel %vm59, %v211, 0
    %v237 = vsel %vm59, %v212, 0
    %v240 = vsel %vm59, %v213, 0
    %242 = vmatprep.subr.mxu0 0.0
    %243 = vmatpush1.msra.mxu0 0.0
    %244 = vmatprep.subr.mxu0 0.0
    %245 = vmatpush1.msra.mxu0 0.0
    %246 = vmatprep.subr.mxu0 0.0
    %247 = vmatpush1.msra.mxu0 0.0
    %248 = vmatprep.subr.mxu0 0.0
    %249 = vmatpush1.msra.mxu0 0.0
    %250 = vmatprep.subr.mxu0 0.0
    %251 = vmatpush1.msra.mxu0 0.0
    %252 = vmatprep.subr.mxu0 0.0
    %253 = vmatpush1.msra.mxu0 0.0
    %254 = vmatprep.subr.mxu0 0.0
    %255 = vmatpush1.msra.mxu0 0.0
    %256 = vmatprep.subr.mxu0 0.0
    %257 = vmatpush1.msra.mxu0 0.0
    %258 = vmatprep.subr.mxu0 0.0
    %259 = vmatpush1.msra.mxu0 0.0
    %260 = vmatprep.subr.mxu0 0.0
    %261 = vmatpush1.msra.mxu0 0.0
    %262 = vmatprep.subr.mxu0 0.0
    %263 = vmatpush1.msra.mxu0 0.0
    %264 = vmatprep.subr.mxu0 0.0
    %265 = vmatpush1.msra.mxu0 0.0
    %266 = vmatprep.subr.mxu0 0.0
    %267 = vmatpush1.msra.mxu0 %v208
    %268 = vmatprep.subr.mxu0 0.0
    %269 = vmatpush1.msra.mxu0 %v207
    %270 = vmatprep.subr.mxu0 0.0
    %271 = vmatpush1.msra.mxu0 %v206
    %272 = vmatprep.subr.mxu0 0.0
    %273 = vmatpush1.msra.mxu0 %v205
    %274 = vmatprep.subr.mxu0 0.0
    %275 = vmatpush2.msra.mxu0 0.0
    %276 = vmatprep.subr.mxu0 0.0
    %277 = vmatpush2.msra.mxu0 0.0
    %278 = vmatprep.subr.mxu0 0.0
    %279 = vmatpush2.msra.mxu0 0.0
    %280 = vmatprep.subr.mxu0 0.0
    %281 = vmatpush2.msra.mxu0 0.0
    %282 = vmatprep.subr.mxu0 0.0
    %283 = vmatpush2.msra.mxu0 0.0
    %284 = vmatprep.subr.mxu0 0.0
    %285 = vmatpush2.msra.mxu0 0.0
    %286 = vmatprep.subr.mxu0 0.0
    %287 = vmatpush2.msra.mxu0 0.0
    %288 = vmatprep.subr.mxu0 0.0
    %289 = vmatpush2.msra.mxu0 0.0
    %290 = vmatprep.subr.mxu0 0.0
    %291 = vmatpush2.msra.mxu0 0.0
    %292 = vmatprep.subr.mxu0 0.0
    %293 = vmatpush2.msra.mxu0 0.0
    %294 = vmatprep.subr.mxu0 0.0
    %295 = vmatpush2.msra.mxu0 0.0
    %296 = vmatprep.subr.mxu0 0.0
    %297 = vmatpush2.msra.mxu0 0.0
    %298 = vmatprep.subr.mxu0 0.0
    %299 = vmatpush2.msra.mxu0 0.0
    %300 = vmatprep.subr.mxu0 0.0
    %301 = vmatpush2.msra.mxu0 0.0
    %302 = vmatprep.subr.mxu0 0.0
    %303 = vmatpush2.msra.mxu0 0.0
    %304 = vmatprep.subr.mxu0 0.0
    %305 = vmatpush2.msra.mxu0 0.0
    %306 = vmatprep.mubr.f32.mxu0 0.0
    %307 = vmatmul.mubr.f32.gmra.mxu0 %v231
    %v308 = vpop.f32.mrf.mxu0
    %v309 = vadd.f32 %v216, %v308
    %v310 = vpop.f32.mrf.mxu0
    %311 = vmatprep.mubr.f32.mxu0 0.0
    %312 = vmatmul.mubr.f32.gmra.mxu0 %v234
    %v313 = vpop.f32.mrf.mxu0
    %v314 = vadd.f32 %v220, %v313
    %v315 = vpop.f32.mrf.mxu0
    %316 = vmatprep.mubr.f32.mxu0 0.0
    %317 = vmatmul.mubr.f32.gmra.mxu0 %v237
    %v318 = vpop.f32.mrf.mxu0
    %v319 = vadd.f32 %v224, %v318
    %v320 = vpop.f32.mrf.mxu0
    %321 = vmatprep.mubr.f32.mxu0 0.0
    %322 = vmatmul.mubr.f32.gmra.mxu0 %v240
    %v323 = vpop.f32.mrf.mxu0
    %v324 = vadd.f32 %v228, %v323
    %v325 = vpop.f32.mrf.mxu0
    %326 = vdwg.mxu0
    %v327 = vmax.f32 %v309, 0.0
    %v328 = vmax.f32 %v314, 0.0
    %v329 = vmax.f32 %v319, 0.0
    %v330 = vmax.f32 %v324, 0.0
    %s331 = scalar_lea.vmem %s1, 64
    %v332 = vld [vmem:[%s331] sm:$0xff]
    %v333 = vld [vmem:[%s331 + $0x8] sm:$0xff]
    %v334 = vld [vmem:[%s331 + $0x10] sm:$0xff]
    %v335 = vld [vmem:[%s331 + $0x18] sm:$0xff]
    %336 = vset.pattern.permute.xlu0 2
    %337 = vperm.xlu0 %336, %v35
    %v338 = vpop.permute.xlu0 %337
    %340 = vset.pattern.permute.xlu0 2
    %341 = vperm.xlu0 %340, %v36
    %v342 = vpop.permute.xlu0 %341
    %344 = vset.pattern.permute.xlu0 2
    %345 = vperm.xlu0 %344, %v37
    %v346 = vpop.permute.xlu0 %345
    %348 = vset.pattern.permute.xlu0 2
    %349 = vperm.xlu0 %348, %v38
    %v350 = vpop.permute.xlu0 %349
    %v353 = vsel %vm59, %v332, 0
    %v356 = vsel %vm59, %v333, 0
    %v359 = vsel %vm59, %v334, 0
    %v362 = vsel %vm59, %v335, 0
    %364 = vmatprep.subr.mxu0 0.0
    %365 = vmatpush1.msra.mxu0 0.0
    %366 = vmatprep.subr.mxu0 0.0
    %367 = vmatpush1.msra.mxu0 0.0
    %368 = vmatprep.subr.mxu0 0.0
    %369 = vmatpush1.msra.mxu0 0.0
    %370 = vmatprep.subr.mxu0 0.0
    %371 = vmatpush1.msra.mxu0 0.0
    %372 = vmatprep.subr.mxu0 0.0
    %373 = vmatpush1.msra.mxu0 0.0
    %374 = vmatprep.subr.mxu0 0.0
    %375 = vmatpush1.msra.mxu0 0.0
    %376 = vmatprep.subr.mxu0 0.0
    %377 = vmatpush1.msra.mxu0 0.0
    %378 = vmatprep.subr.mxu0 0.0
    %379 = vmatpush1.msra.mxu0 0.0
    %380 = vmatprep.subr.mxu0 0.0
    %381 = vmatpush1.msra.mxu0 0.0
    %382 = vmatprep.subr.mxu0 0.0
    %383 = vmatpush1.msra.mxu0 0.0
    %384 = vmatprep.subr.mxu0 0.0
    %385 = vmatpush1.msra.mxu0 0.0
    %386 = vmatprep.subr.mxu0 0.0
    %387 = vmatpush1.msra.mxu0 0.0
    %388 = vmatprep.subr.mxu0 0.0
    %389 = vmatpush1.msra.mxu0 %v330
    %390 = vmatprep.subr.mxu0 0.0
    %391 = vmatpush1.msra.mxu0 %v329
    %392 = vmatprep.subr.mxu0 0.0
    %393 = vmatpush1.msra.mxu0 %v328
    %394 = vmatprep.subr.mxu0 0.0
    %395 = vmatpush1.msra.mxu0 %v327
    %396 = vmatprep.subr.mxu0 0.0
    %397 = vmatpush2.msra.mxu0 0.0
    %398 = vmatprep.subr.mxu0 0.0
    %399 = vmatpush2.msra.mxu0 0.0
    %400 = vmatprep.subr.mxu0 0.0
    %401 = vmatpush2.msra.mxu0 0.0
    %402 = vmatprep.subr.mxu0 0.0
    %403 = vmatpush2.msra.mxu0 0.0
    %404 = vmatprep.subr.mxu0 0.0
    %405 = vmatpush2.msra.mxu0 0.0
    %406 = vmatprep.subr.mxu0 0.0
    %407 = vmatpush2.msra.mxu0 0.0
    %408 = vmatprep.subr.mxu0 0.0
    %409 = vmatpush2.msra.mxu0 0.0
    %410 = vmatprep.subr.mxu0 0.0
    %411 = vmatpush2.msra.mxu0 0.0
    %412 = vmatprep.subr.mxu0 0.0
    %413 = vmatpush2.msra.mxu0 0.0
    %414 = vmatprep.subr.mxu0 0.0
    %415 = vmatpush2.msra.mxu0 0.0
    %416 = vmatprep.subr.mxu0 0.0
    %417 = vmatpush2.msra.mxu0 0.0
    %418 = vmatprep.subr.mxu0 0.0
    %419 = vmatpush2.msra.mxu0 0.0
    %420 = vmatprep.subr.mxu0 0.0
    %421 = vmatpush2.msra.mxu0 0.0
    %422 = vmatprep.subr.mxu0 0.0
    %423 = vmatpush2.msra.mxu0 0.0
    %424 = vmatprep.subr.mxu0 0.0
    %425 = vmatpush2.msra.mxu0 0.0
    %426 = vmatprep.subr.mxu0 0.0
    %427 = vmatpush2.msra.mxu0 0.0
    %428 = vmatprep.mubr.f32.mxu0 0.0
    %429 = vmatmul.mubr.f32.gmra.mxu0 %v353
    %v430 = vpop.f32.mrf.mxu0
    %v431 = vadd.f32 %v338, %v430
    %v432 = vpop.f32.mrf.mxu0
    %433 = vmatprep.mubr.f32.mxu0 0.0
    %434 = vmatmul.mubr.f32.gmra.mxu0 %v356
    %v435 = vpop.f32.mrf.mxu0
    %v436 = vadd.f32 %v342, %v435
    %v437 = vpop.f32.mrf.mxu0
    %438 = vmatprep.mubr.f32.mxu0 0.0
    %439 = vmatmul.mubr.f32.gmra.mxu0 %v359
    %v440 = vpop.f32.mrf.mxu0
    %v441 = vadd.f32 %v346, %v440
    %v442 = vpop.f32.mrf.mxu0
    %443 = vmatprep.mubr.f32.mxu0 0.0
    %444 = vmatmul.mubr.f32.gmra.mxu0 %v362
    %v445 = vpop.f32.mrf.mxu0
    %v446 = vadd.f32 %v350, %v445
    %v447 = vpop.f32.mrf.mxu0
    %448 = vdwg.mxu0
    %v449 = vmax.f32 %v431, 0.0
    %v450 = vmax.f32 %v436, 0.0
    %v451 = vmax.f32 %v441, 0.0
    %v452 = vmax.f32 %v446, 0.0
    %s453 = scalar_lea.vmem %s1, 96
    %v454 = vld [vmem:[%s453] sm:$0xff]
    %v455 = vld [vmem:[%s453 + $0x8] sm:$0xff]
    %v456 = vld [vmem:[%s453 + $0x10] sm:$0xff]
    %v457 = vld [vmem:[%s453 + $0x18] sm:$0xff]
    %458 = vset.pattern.permute.xlu0 3
    %459 = vperm.xlu0 %458, %v35
    %v460 = vpop.permute.xlu0 %459
    %462 = vset.pattern.permute.xlu0 3
    %463 = vperm.xlu0 %462, %v36
    %v464 = vpop.permute.xlu0 %463
    %466 = vset.pattern.permute.xlu0 3
    %467 = vperm.xlu0 %466, %v37
    %v468 = vpop.permute.xlu0 %467
    %470 = vset.pattern.permute.xlu0 3
    %471 = vperm.xlu0 %470, %v38
    %v472 = vpop.permute.xlu0 %471
    %v475 = vsel %vm59, %v454, 0
    %v478 = vsel %vm59, %v455, 0
    %v481 = vsel %vm59, %v456, 0
    %v484 = vsel %vm59, %v457, 0
    %486 = vmatprep.subr.mxu0 0.0
    %487 = vmatpush1.msra.mxu0 0.0
    %488 = vmatprep.subr.mxu0 0.0
    %489 = vmatpush1.msra.mxu0 0.0
    %490 = vmatprep.subr.mxu0 0.0
    %491 = vmatpush1.msra.mxu0 0.0
    %492 = vmatprep.subr.mxu0 0.0
    %493 = vmatpush1.msra.mxu0 0.0
    %494 = vmatprep.subr.mxu0 0.0
    %495 = vmatpush1.msra.mxu0 0.0
    %496 = vmatprep.subr.mxu0 0.0
    %497 = vmatpush1.msra.mxu0 0.0
    %498 = vmatprep.subr.mxu0 0.0
    %499 = vmatpush1.msra.mxu0 0.0
    %500 = vmatprep.subr.mxu0 0.0
    %501 = vmatpush1.msra.mxu0 0.0
    %502 = vmatprep.subr.mxu0 0.0
    %503 = vmatpush1.msra.mxu0 0.0
    %504 = vmatprep.subr.mxu0 0.0
    %505 = vmatpush1.msra.mxu0 0.0
    %506 = vmatprep.subr.mxu0 0.0
    %507 = vmatpush1.msra.mxu0 0.0
    %508 = vmatprep.subr.mxu0 0.0
    %509 = vmatpush1.msra.mxu0 0.0
    %510 = vmatprep.subr.mxu0 0.0
    %511 = vmatpush1.msra.mxu0 %v452
    %512 = vmatprep.subr.mxu0 0.0
    %513 = vmatpush1.msra.mxu0 %v451
    %514 = vmatprep.subr.mxu0 0.0
    %515 = vmatpush1.msra.mxu0 %v450
    %516 = vmatprep.subr.mxu0 0.0
    %517 = vmatpush1.msra.mxu0 %v449
    %518 = vmatprep.subr.mxu0 0.0
    %519 = vmatpush2.msra.mxu0 0.0
    %520 = vmatprep.subr.mxu0 0.0
    %521 = vmatpush2.msra.mxu0 0.0
    %522 = vmatprep.subr.mxu0 0.0
    %523 = vmatpush2.msra.mxu0 0.0
    %524 = vmatprep.subr.mxu0 0.0
    %525 = vmatpush2.msra.mxu0 0.0
    %526 = vmatprep.subr.mxu0 0.0
    %527 = vmatpush2.msra.mxu0 0.0
    %528 = vmatprep.subr.mxu0 0.0
    %529 = vmatpush2.msra.mxu0 0.0
    %530 = vmatprep.subr.mxu0 0.0
    %531 = vmatpush2.msra.mxu0 0.0
    %532 = vmatprep.subr.mxu0 0.0
    %533 = vmatpush2.msra.mxu0 0.0
    %534 = vmatprep.subr.mxu0 0.0
    %535 = vmatpush2.msra.mxu0 0.0
    %536 = vmatprep.subr.mxu0 0.0
    %537 = vmatpush2.msra.mxu0 0.0
    %538 = vmatprep.subr.mxu0 0.0
    %539 = vmatpush2.msra.mxu0 0.0
    %540 = vmatprep.subr.mxu0 0.0
    %541 = vmatpush2.msra.mxu0 0.0
    %542 = vmatprep.subr.mxu0 0.0
    %543 = vmatpush2.msra.mxu0 0.0
    %544 = vmatprep.subr.mxu0 0.0
    %545 = vmatpush2.msra.mxu0 0.0
    %546 = vmatprep.subr.mxu0 0.0
    %547 = vmatpush2.msra.mxu0 0.0
    %548 = vmatprep.subr.mxu0 0.0
    %549 = vmatpush2.msra.mxu0 0.0
    %550 = vmatprep.mubr.f32.mxu0 0.0
    %551 = vmatmul.mubr.f32.gmra.mxu0 %v475
    %v552 = vpop.f32.mrf.mxu0
    %v553 = vadd.f32 %v460, %v552
    %v554 = vpop.f32.mrf.mxu0
    %555 = vmatprep.mubr.f32.mxu0 0.0
    %556 = vmatmul.mubr.f32.gmra.mxu0 %v478
    %v557 = vpop.f32.mrf.mxu0
    %v558 = vadd.f32 %v464, %v557
    %v559 = vpop.f32.mrf.mxu0
    %560 = vmatprep.mubr.f32.mxu0 0.0
    %561 = vmatmul.mubr.f32.gmra.mxu0 %v481
    %v562 = vpop.f32.mrf.mxu0
    %v563 = vadd.f32 %v468, %v562
    %v564 = vpop.f32.mrf.mxu0
    %565 = vmatprep.mubr.f32.mxu0 0.0
    %566 = vmatmul.mubr.f32.gmra.mxu0 %v484
    %v567 = vpop.f32.mrf.mxu0
    %v568 = vadd.f32 %v472, %v567
    %v569 = vpop.f32.mrf.mxu0
    %570 = vdwg.mxu0
    %v571 = vmax.f32 %v553, 0.0
    %v572 = vmax.f32 %v558, 0.0
    %v573 = vmax.f32 %v563, 0.0
    %v574 = vmax.f32 %v568, 0.0
    %s575 = scalar_lea.vmem %s1, 128
    %v576 = vld [vmem:[%s575] sm:$0xff]
    %v577 = vld [vmem:[%s575 + $0x8] sm:$0xff]
    %v578 = vld [vmem:[%s575 + $0x10] sm:$0xff]
    %v579 = vld [vmem:[%s575 + $0x18] sm:$0xff]
    %580 = vset.pattern.permute.xlu0 4
    %581 = vperm.xlu0 %580, %v35
    %v582 = vpop.permute.xlu0 %581
    %584 = vset.pattern.permute.xlu0 4
    %585 = vperm.xlu0 %584, %v36
    %v586 = vpop.permute.xlu0 %585
    %587 = vset.pattern.permute.xlu0 4
    %588 = vperm.xlu0 %587, %v37
    %v589 = vpop.permute.xlu0 %588
    %590 = vset.pattern.permute.xlu0 4
    %591 = vperm.xlu0 %590, %v38
    %v592 = vpop.permute.xlu0 %591
    %v594 = vsel %vm59, %v576, 0
    %v597 = vsel %vm59, %v577, 0
    %v600 = vsel %vm59, %v578, 0
    %v603 = vsel %vm59, %v579, 0
    %605 = vmatprep.subr.mxu0 0.0
    %606 = vmatpush1.msra.mxu0 0.0
    %607 = vmatprep.subr.mxu0 0.0
    %608 = vmatpush1.msra.mxu0 0.0
    %609 = vmatprep.subr.mxu0 0.0
    %610 = vmatpush1.msra.mxu0 0.0
    %611 = vmatprep.subr.mxu0 0.0
    %612 = vmatpush1.msra.mxu0 0.0
    %613 = vmatprep.subr.mxu0 0.0
    %614 = vmatpush1.msra.mxu0 0.0
    %615 = vmatprep.subr.mxu0 0.0
    %616 = vmatpush1.msra.mxu0 0.0
    %617 = vmatprep.subr.mxu0 0.0
    %618 = vmatpush1.msra.mxu0 0.0
    %619 = vmatprep.subr.mxu0 0.0
    %620 = vmatpush1.msra.mxu0 0.0
    %621 = vmatprep.subr.mxu0 0.0
    %622 = vmatpush1.msra.mxu0 0.0
    %623 = vmatprep.subr.mxu0 0.0
    %624 = vmatpush1.msra.mxu0 0.0
    %625 = vmatprep.subr.mxu0 0.0
    %626 = vmatpush1.msra.mxu0 0.0
    %627 = vmatprep.subr.mxu0 0.0
    %628 = vmatpush1.msra.mxu0 0.0
    %629 = vmatprep.subr.mxu0 0.0
    %630 = vmatpush1.msra.mxu0 %v574
    %631 = vmatprep.subr.mxu0 0.0
    %632 = vmatpush1.msra.mxu0 %v573
    %633 = vmatprep.subr.mxu0 0.0
    %634 = vmatpush1.msra.mxu0 %v572
    %635 = vmatprep.subr.mxu0 0.0
    %636 = vmatpush1.msra.mxu0 %v571
    %637 = vmatprep.subr.mxu0 0.0
    %638 = vmatpush2.msra.mxu0 0.0
    %639 = vmatprep.subr.mxu0 0.0
    %640 = vmatpush2.msra.mxu0 0.0
    %641 = vmatprep.subr.mxu0 0.0
    %642 = vmatpush2.msra.mxu0 0.0
    %643 = vmatprep.subr.mxu0 0.0
    %644 = vmatpush2.msra.mxu0 0.0
    %645 = vmatprep.subr.mxu0 0.0
    %646 = vmatpush2.msra.mxu0 0.0
    %647 = vmatprep.subr.mxu0 0.0
    %648 = vmatpush2.msra.mxu0 0.0
    %649 = vmatprep.subr.mxu0 0.0
    %650 = vmatpush2.msra.mxu0 0.0
    %651 = vmatprep.subr.mxu0 0.0
    %652 = vmatpush2.msra.mxu0 0.0
    %653 = vmatprep.subr.mxu0 0.0
    %654 = vmatpush2.msra.mxu0 0.0
    %655 = vmatprep.subr.mxu0 0.0
    %656 = vmatpush2.msra.mxu0 0.0
    %657 = vmatprep.subr.mxu0 0.0
    %658 = vmatpush2.msra.mxu0 0.0
    %659 = vmatprep.subr.mxu0 0.0
    %660 = vmatpush2.msra.mxu0 0.0
    %661 = vmatprep.subr.mxu0 0.0
    %662 = vmatpush2.msra.mxu0 0.0
    %663 = vmatprep.subr.mxu0 0.0
    %664 = vmatpush2.msra.mxu0 0.0
    %665 = vmatprep.subr.mxu0 0.0
    %666 = vmatpush2.msra.mxu0 0.0
    %667 = vmatprep.subr.mxu0 0.0
    %668 = vmatpush2.msra.mxu0 0.0
    %669 = vmatprep.mubr.f32.mxu0 0.0
    %670 = vmatmul.mubr.f32.gmra.mxu0 %v594
    %v671 = vpop.f32.mrf.mxu0
    %v672 = vadd.f32 %v582, %v671
    %v673 = vpop.f32.mrf.mxu0
    %674 = vmatprep.mubr.f32.mxu0 0.0
    %675 = vmatmul.mubr.f32.gmra.mxu0 %v597
    %v676 = vpop.f32.mrf.mxu0
    %v677 = vpop.f32.mrf.mxu0
    %678 = vmatprep.mubr.f32.mxu0 0.0
    %679 = vmatmul.mubr.f32.gmra.mxu0 %v600
    %v680 = vpop.f32.mrf.mxu0
    %v681 = vpop.f32.mrf.mxu0
    %682 = vmatprep.mubr.f32.mxu0 0.0
    %683 = vmatmul.mubr.f32.gmra.mxu0 %v603
    %v684 = vpop.f32.mrf.mxu0
    %v685 = vpop.f32.mrf.mxu0
    %686 = vdwg.mxu0
    %v687 = vmax.f32 %v672, 0.0
    %v689 = vrot.slane %v687, 1
    %v691 = vadd.f32 %v687, %v689
    %v692 = vrot.slane %v687, 2
    %v694 = vadd.f32 %v691, %v692
    %v695 = vrot.slane %v687, 3
    %v697 = vadd.f32 %v694, %v695
    %v698 = vmul.f32 %v697, 0.25
    %699 = vst [vmem:[#allocation2] sm:$0x1] %v698
    // Predicated region
    $region14: #{tpu_custom_call.1} parent=1 // pred_check
      _
    $region15: #{tpu_custom_call.1} parent=1 // pred_check_branch
      %701 = sbr.rel (0) target = $region17
    $region16: #{tpu_custom_call.1} parent=1 // pred_region
      %s703 = ssub.s32 16, 16
      %704 = vsyncadd [#allocation3], %s703
      %s706 = sshll.u32 [#allocation2], 4
      %s707 = int_to_ptr.vmem [resolvable:$true] %s706
      %709 = dma.vmem_to_hbm [thread:$0]  %s707, 16, %s3, [#allocation3]
    $region17: #{tpu_custom_call.1} parent=1 // pred_fallthru
      _
    // Predicated region
    $region18: #{tpu_custom_call.1} parent=1 // pred_check
      _
    $region19: #{tpu_custom_call.1} parent=1 // pred_check_branch
      %711 = sbr.rel (0) target = $region21
    $region20: #{tpu_custom_call.1} parent=1 // pred_region
      %712 = dma.done [#allocation3], 16
    $region21: #{tpu_custom_call.1} parent=1 // pred_fallthru
      _
    %713 = vsyncpa [#allocation3], 1

</llo_original>
